<compile_context>
chip_gen: v6e
topology: v6e:2x2x1
jax: 0.10.0
libtpu: 0.0.40
codegen_flags: <defaults>
</compile_context>

<pallas_src>
import functools
import math

import jax
import jax.numpy as jnp
from jax import lax
from jax.experimental import pallas as pl
from jax.experimental.pallas import tpu as pltpu

_EPS = 1e-07       # clamp used by the PyTorch module
_COS_EPS = 1e-08   # torch.nn.functional.cosine_similarity default eps
_CHUNK = 256       # rows per in-kernel compute chunk (multiple of every sublane granule)

_LANE_MAJOR_OK = None   # cached probe: does the lane-major output layout lower?


def _cdiv(a, b):
    return -(-a // b)


def _round_up(n, m):
    return _cdiv(n, m) * m


@functools.lru_cache(maxsize=1)
def _device_profile():
    """Returns (physical VMEM bytes, fast-HBM (v7x-class), two TensorCores)."""
    vmem_bytes = 128 << 20
    try:
        info = pltpu.get_tpu_info()
        v = getattr(info, "vmem_capacity_bytes", None)
        if v:
            vmem_bytes = int(v)
    except Exception:
        pass
    kind = ""
    try:
        kind = jax.devices()[0].device_kind.lower()
    except Exception:
        pass
    is_v7_class = ("v7" in kind) or ("7x" in kind) or (vmem_bytes <= (64 << 20))
    return vmem_bytes, is_v7_class, is_v7_class


def _plan_block(num_rows, feat_dim, itemsize, *, target_bytes, limit_cap,
                two_cores, buffers, block_b=None):
    """Pick (block_rows, chunk_rows, num_blocks) for the 1-D grid."""
    granule = max(8, 32 // itemsize)            # f32: 8, bf16: 16, 1-byte: 32
    padded_d = _round_up(feat_dim, 128)         # lane padding of a (rows, D) VMEM tile
    if block_b is not None:
        rows = max(granule, int(block_b))
    else:
        # useful-HBM-bytes target per input per grid step (amortizes ~0.35us/step)
        rows = max(granule, int(target_bytes) // max(feat_dim * itemsize, 1))
        # VMEM clamp on the lane-padded pipeline buffers (2 inputs x `buffers`),
        # leaving >= 24 MiB for output buffers, per-chunk f32 temporaries and
        # Mosaic internal scratch (also covers the column-output fallback).
        input_budget = max(limit_cap - (24 << 20), 8 << 20)
        rows = min(rows, max(granule,
                             input_budget // (2 * buffers * padded_d * itemsize)))
        # never (much) larger than the whole batch
        rows = min(rows, _round_up(num_rows, granule))
        if two_cores:
            nb = _cdiv(num_rows, rows)
            if nb == 1 and rows > _CHUNK:
                rows = _round_up(_cdiv(rows, 2), _CHUNK)            # one tile per TC
            elif nb > 1 and nb % 2 == 1:
                rows = _round_up(_cdiv(num_rows, nb + 1), _CHUNK)   # even block count
    if rows >= _CHUNK:
        rows = _round_up(rows, _CHUNK)
        chunk = _CHUNK
    else:
        rows = _round_up(rows, granule)
        chunk = rows
    return rows, chunk, _cdiv(num_rows, rows)


def _vmem_limit_bytes(block_rows, chunk, feat_dim, itemsize, buffers, lane_major,
                      limit_cap):
    padded_d = _round_up(feat_dim, 128)
    in_bytes = 2 * buffers * block_rows * padded_d * itemsize        # lane-padded tiles
    if lane_major:
        n_chunks = block_rows // chunk
        out_block = _round_up(n_chunks, 8) * _round_up(chunk, 128) * 4
    else:
        out_block = block_rows * 128 * 4     # (rows, 1) column is padded to 128 lanes
    out_bytes = buffers * out_block
    tmp_bytes = 8 * chunk * padded_d * 4     # per-chunk f32 upcasts / products (generous)
    needed = in_bytes + out_bytes + tmp_bytes + (4 << 20)            # Mosaic scratch slack
    return int(min(max(needed, 16 << 20), limit_cap))


def _arc_margin_kernel(x_ref, y_ref, o_ref, *, chunk, lane_major, cos_m, sin_m,
                       th, mm, inv_temperature, easy_margin, is_hard_examples):
    block_rows = x_ref.shape[0]
    n_chunks = block_rows // chunk
    align = chunk & (-chunk)                 # largest power-of-two divisor of `chunk`

    def chunk_result(r0):
        # f32 upcast + products only ever live for one chunk of rows, never the
        # whole DMA tile (keeps the live f32 working set to a few vregs/KiB).
        x = x_ref[pl.ds(r0, chunk), :].astype(jnp.float32)
        y = y_ref[pl.ds(r0, chunk), :].astype(jnp.float32)
        dot = jnp.sum(x * y, axis=-1, keepdims=True)
        xx = jnp.sum(x * x, axis=-1, keepdims=True)
        yy = jnp.sum(y * y, axis=-1, keepdims=True)
        # 1 / (max(||x||, eps) * max(||y||, eps)) with a single EUP rsqrt;
        # matches torch cosine_similarity's per-norm eps clamp.
        inv_denom = lax.rsqrt(jnp.maximum(xx, _COS_EPS * _COS_EPS) *
                              jnp.maximum(yy, _COS_EPS * _COS_EPS))
        cos_theta = jnp.clip(dot * inv_denom, -1.0 + _EPS, 1.0 - _EPS)
        if is_hard_examples:
            # clamp(1-cos^2, EPS, 1-EPS) matches the module (not the usual [0,1]).
            sin_theta = jnp.sqrt(jnp.clip(1.0 - cos_theta * cos_theta, _EPS, 1.0 - _EPS))
            phi = cos_theta * cos_m - sin_theta * sin_m
            if easy_margin:
                phi = jnp.where(cos_theta > 0.0, phi, cos_theta)
            else:
                phi = jnp.where(cos_theta > th, phi, cos_theta - mm)
            result = phi
        else:
            result = cos_theta      # cos-only variant compiles out all sin/phi work
        # NOTE: masked-tail padding rows may produce NaN/Inf here; they are
        # discarded by the wrapper's [:B] slice (harmless on TPU).
        return (result * inv_temperature).astype(o_ref.dtype)   # (chunk, 1)

    def body(c, carry):
        r0 = pl.multiple_of(c * chunk, align)
        res = chunk_result(r0)
        if lane_major:
            # (chunk, 1) per-row column -> lane-major (chunk,) row of the output
            # block (small XLU relayout; plenty of slack in this mem-bound kernel).
            o_ref[0, c, :] = res[:, 0]
        else:
            o_ref[pl.ds(r0, chunk), :] = res
        return carry

    lax.fori_loop(0, n_chunks, body, 0)


def _pallas_forward(x2, y2, *, lane_major, block_rows, chunk, num_blocks,
                    buffers, vmem_limit, kernel_kwargs):
    D = x2.shape[1]
    kernel = functools.partial(_arc_margin_kernel, chunk=chunk,
                               lane_major=lane_major, **kernel_kwargs)
    spec_kwargs = {}
    if buffers != 2:
        # Only worth trying for very small D where per-step DMA is shorter than
        # the fixed step overhead; otherwise it just multiplies VMEM footprint.
        spec_kwargs["pipeline_mode"] = pl.Buffered(buffers)
    in_spec = pl.BlockSpec((block_rows, D), lambda i: (i, 0), **spec_kwargs)

    if lane_major:
        n_chunks = block_rows // chunk
        # Row-major (num_blocks, n_chunks, chunk) == flat batch order; dense
        # lane-major stores + contiguous writeback DMA + tiny output buffers.
        out_shape = jax.ShapeDtypeStruct((num_blocks, n_chunks, chunk), jnp.float32)
        out_spec = pl.BlockSpec((1, n_chunks, chunk), lambda i: (i, 0, 0))
    else:
        out_shape = jax.ShapeDtypeStruct((num_blocks * block_rows, 1), jnp.float32)
        out_spec = pl.BlockSpec((block_rows, 1), lambda i: (i, 0))

    return pl.pallas_call(
        kernel,
        out_shape=out_shape,
        grid_spec=pltpu.PrefetchScalarGridSpec(
            num_scalar_prefetch=0,
            grid=(num_blocks,),
            in_specs=[in_spec, in_spec],
            out_specs=out_spec),
        compiler_params=pltpu.CompilerParams(
            dimension_semantics=("parallel",),
            vmem_limit_bytes=vmem_limit),
    )(x2, y2)


def arc_margin_product(x, y, is_hard_examples, *, margin=0.1, temperature=0.1,
                       easy_margin=False, block_b=None, num_buffers=None,
                       target_block_bytes=None, out_dtype=jnp.float32):
    """ArcMarginProduct forward.

    x, y: (..., D) arrays (float32 or bfloat16); cosine similarity over the
    last axis.  `is_hard_examples` must be a static Python bool (selects the
    compiled variant).  Returns `out_dtype` (default float32; the PyTorch
    module returns the input dtype — kept f32 here for accuracy) with shape
    x.shape[:-1].
    """
    global _LANE_MAJOR_OK
    if not isinstance(is_hard_examples, bool):
        raise TypeError("is_hard_examples must be a static Python bool; it selects "
                        "which kernel variant is compiled (cannot be a traced value).")
    if x.shape != y.shape or x.ndim < 1:
        raise ValueError(f"x and y must share a (..., D) shape, got {x.shape} vs {y.shape}")

    *lead, D = x.shape
    lead = tuple(lead)
    x2 = x.reshape(-1, D)       # free row-major reinterpretation
    y2 = y.reshape(-1, D)
    B = x2.shape[0]
    if B == 0:
        return jnp.zeros(lead, out_dtype)

    itemsize = jnp.dtype(x.dtype).itemsize
    vmem_bytes, fast_hbm, two_cores = _device_profile()
    # Hard headroom for Mosaic internal scratch + the f32 working set; v7x-class
    # parts only have 64 MiB VMEM per TensorCore.
    limit_cap = (48 << 20) if vmem_bytes <= (64 << 20) else (96 << 20)
    if target_block_bytes is None:
        # ~2 MiB/input/step is on the HBM-roofline plateau for v5e/v6e; v7x's
        # 3.2 TB/s needs ~4 MiB to keep the ~0.35 us/step overhead under ~10%.
        target_block_bytes = (4 << 20) if fast_hbm else (2 << 20)
    buffers = 2 if num_buffers is None else max(2, int(num_buffers))

    block_rows, chunk, num_blocks = _plan_block(
        B, D, itemsize, target_bytes=target_block_bytes, limit_cap=limit_cap,
        two_cores=two_cores, buffers=buffers, block_b=block_b)

    kernel_kwargs = dict(
        cos_m=math.cos(margin), sin_m=math.sin(margin),
        th=math.cos(math.pi - margin), mm=math.sin(math.pi - margin) * margin,
        inv_temperature=1.0 / temperature,
        easy_margin=bool(easy_margin), is_hard_examples=is_hard_examples)

    def run(lane_major):
        vmem_limit = _vmem_limit_bytes(block_rows, chunk, D, itemsize, buffers,
                                       lane_major, limit_cap)
        out = _pallas_forward(x2, y2, lane_major=lane_major, block_rows=block_rows,
                              chunk=chunk, num_blocks=num_blocks, buffers=buffers,
                              vmem_limit=vmem_limit, kernel_kwargs=kernel_kwargs)
        flat = out.reshape(-1)
        if flat.shape[0] != B:
            flat = flat[:B]             # drop the padded tail of the last block
        return flat.reshape(lead).astype(out_dtype)

    # Prefer the lane-dense output layout; fall back (cached) to the proven
    # (rows, 1) column layout if the sublane->lane relayout fails to lower.
    # (The probe only works in eager mode; once cached the choice is stable.)
    if _LANE_MAJOR_OK is not False:
        try:
            res = run(True)
            if _LANE_MAJOR_OK is None:
                res = jax.block_until_ready(res)   # surface compile errors now
            _LANE_MAJOR_OK = True
            return res
        except Exception:
            _LANE_MAJOR_OK = False
    return run(False)


def _reference(x, y, is_hard_examples, *, margin=0.1, temperature=0.1,
               easy_margin=False):
    x = x.astype(jnp.float32)
    y = y.astype(jnp.float32)
    cos_m = math.cos(margin)
    sin_m = math.sin(margin)
    th = math.cos(math.pi - margin)
    mm = math.sin(math.pi - margin) * margin
    dot = jnp.sum(x * y, axis=-1)
    denom = (jnp.maximum(jnp.linalg.norm(x, axis=-1), _COS_EPS) *
             jnp.maximum(jnp.linalg.norm(y, axis=-1), _COS_EPS))
    cos_theta = jnp.clip(dot / denom, -1.0 + _EPS, 1.0 - _EPS)
    sin_theta = jnp.sqrt(jnp.clip(1.0 - cos_theta * cos_theta, _EPS, 1.0 - _EPS))
    phi = cos_theta * cos_m - sin_theta * sin_m
    if easy_margin:
        phi = jnp.where(cos_theta > 0.0, phi, cos_theta)
    else:
        phi = jnp.where(cos_theta > th, phi, cos_theta - mm)
    return (phi if is_hard_examples else cos_theta) / temperature


if __name__ == "__main__":
    key = jax.random.PRNGKey(0)
    k0, k1, k2, k3, k4, k5 = jax.random.split(key, 6)

    # Case 1: plain (B, D) float32 inputs (single small block, both variants).
    B, D = 64, 128
    x = jax.random.normal(k0, (B, D), dtype=jnp.float32)
    y = jax.random.normal(k1, (B, D), dtype=jnp.float32)
    out_hard = jax.block_until_ready(arc_margin_product(x, y, True))
    out_soft = jax.block_until_ready(arc_margin_product(x, y, False))
    assert out_hard.shape == (B,)
    assert jnp.allclose(out_hard, _reference(x, y, True), atol=1e-3, rtol=1e-3)
    assert jnp.allclose(out_soft, _reference(x, y, False), atol=1e-3, rtol=1e-3)

    # Case 2: N-D leading dims, bf16 inputs, small D (lane-padded path).
    xb = jax.random.normal(k2, (2, 3, 40, 32), dtype=jnp.bfloat16)
    yb = jax.random.normal(k3, (2, 3, 40, 32), dtype=jnp.bfloat16)
    out_b = jax.block_until_ready(arc_margin_product(xb, yb, True))
    assert out_b.shape == (2, 3, 40)
    assert jnp.allclose(out_b, _reference(xb, yb, True), atol=2e-3, rtol=2e-3)

    # Case 3: multi-block grid + multi-chunk in-kernel loop + masked input tail
    # (1000 rows into 512-row blocks of two 256-row chunks each).
    xc = jax.random.normal(k4, (1000, 64), dtype=jnp.float32)
    yc = jax.random.normal(k5, (1000, 64), dtype=jnp.float32)
    out_c = jax.block_until_ready(arc_margin_product(xc, yc, True, block_b=512))
    assert out_c.shape == (1000,)
    assert jnp.allclose(out_c, _reference(xc, yc, True), atol=1e-3, rtol=1e-3)

    # Case 4: easy_margin branch.
    out_e = jax.block_until_ready(arc_margin_product(x, y, True, easy_margin=True))
    assert jnp.allclose(out_e, _reference(x, y, True, easy_margin=True),
                        atol=1e-3, rtol=1e-3)

    print("KERNEL_OK")
</pallas_src>

<mosaic_0001>
module attributes {stable_mosaic.version = 11 : i64} {
  func.func @_arc_margin_kernel(%arg0: i32, %arg1: memref<64x128xf32, #tpu.memory_space<vmem>>, %arg2: memref<64x128xf32, #tpu.memory_space<vmem>>, %arg3: memref<1x1x64xf32, #tpu.memory_space<vmem>>) attributes {dimension_semantics = [#tpu.dimension_semantics<parallel>], iteration_bounds = array<i64: 1>, scalar_prefetch = 0 : i64, scratch_operands = 0 : i64, tpu.core_type = #tpu.core_type<tc>, window_params = [{transform_indices = @transform_0, window_bounds = array<i64: 64, 128>}, {transform_indices = @transform_1, window_bounds = array<i64: 64, 128>}, {transform_indices = @transform_2, window_bounds = array<i64: 1, 1, 64>}]} {
    %c0_i32 = arith.constant 0 : i32
    %c64_i32 = arith.constant 64 : i32
    %0 = arith.muli %c0_i32, %c64_i32 : i32
    %1 = tpu.assume_multiple %0, 64 : i32
    %2 = arith.index_cast %1 : i32 to index
    %c0 = arith.constant 0 : index
    %3 = vector.load %arg1[%2, %c0] : memref<64x128xf32, #tpu.memory_space<vmem>>, vector<64x128xf32>
    %4 = arith.index_cast %1 : i32 to index
    %c0_0 = arith.constant 0 : index
    %5 = vector.load %arg2[%4, %c0_0] : memref<64x128xf32, #tpu.memory_space<vmem>>, vector<64x128xf32>
    %6 = arith.mulf %3, %5 : vector<64x128xf32>
    %cst = arith.constant dense<0.000000e+00> : vector<64xf32>
    %7 = vector.multi_reduction <add>, %6, %cst [1] : vector<64x128xf32> to vector<64xf32>
    %8 = vector.shape_cast %7 : vector<64xf32> to vector<64x1xf32>
    %9 = arith.mulf %3, %3 : vector<64x128xf32>
    %cst_1 = arith.constant dense<0.000000e+00> : vector<64xf32>
    %10 = vector.multi_reduction <add>, %9, %cst_1 [1] : vector<64x128xf32> to vector<64xf32>
    %11 = vector.shape_cast %10 : vector<64xf32> to vector<64x1xf32>
    %12 = arith.mulf %5, %5 : vector<64x128xf32>
    %cst_2 = arith.constant dense<0.000000e+00> : vector<64xf32>
    %13 = vector.multi_reduction <add>, %12, %cst_2 [1] : vector<64x128xf32> to vector<64xf32>
    %14 = vector.shape_cast %13 : vector<64xf32> to vector<64x1xf32>
    %cst_3 = arith.constant 1.000000e-16 : f32
    %15 = vector.broadcast %cst_3 : f32 to vector<64x1xf32>
    %16 = arith.maximumf %11, %15 : vector<64x1xf32>
    %cst_4 = arith.constant 1.000000e-16 : f32
    %17 = vector.broadcast %cst_4 : f32 to vector<64x1xf32>
    %18 = arith.maximumf %14, %17 : vector<64x1xf32>
    %19 = arith.mulf %16, %18 : vector<64x1xf32>
    %20 = math.rsqrt %19 : vector<64x1xf32>
    %21 = arith.mulf %8, %20 : vector<64x1xf32>
    %cst_5 = arith.constant -0.99999988 : f32
    %cst_6 = arith.constant 0.99999988 : f32
    %22 = vector.broadcast %cst_5 : f32 to vector<64x1xf32>
    %23 = arith.maximumf %22, %21 : vector<64x1xf32>
    %24 = vector.broadcast %cst_6 : f32 to vector<64x1xf32>
    %25 = arith.minimumf %24, %23 : vector<64x1xf32>
    %26 = arith.mulf %25, %25 : vector<64x1xf32>
    %cst_7 = arith.constant 1.000000e+00 : f32
    %27 = vector.broadcast %cst_7 : f32 to vector<64x1xf32>
    %28 = arith.subf %27, %26 : vector<64x1xf32>
    %cst_8 = arith.constant 1.000000e-07 : f32
    %cst_9 = arith.constant 0.99999988 : f32
    %29 = vector.broadcast %cst_8 : f32 to vector<64x1xf32>
    %30 = arith.maximumf %29, %28 : vector<64x1xf32>
    %31 = vector.broadcast %cst_9 : f32 to vector<64x1xf32>
    %32 = arith.minimumf %31, %30 : vector<64x1xf32>
    %33 = math.sqrt %32 : vector<64x1xf32>
    %cst_10 = arith.constant 0.995004177 : f32
    %34 = vector.broadcast %cst_10 : f32 to vector<64x1xf32>
    %35 = arith.mulf %25, %34 : vector<64x1xf32>
    %cst_11 = arith.constant 0.0998334139 : f32
    %36 = vector.broadcast %cst_11 : f32 to vector<64x1xf32>
    %37 = arith.mulf %33, %36 : vector<64x1xf32>
    %38 = arith.subf %35, %37 : vector<64x1xf32>
    %cst_12 = arith.constant -0.995004177 : f32
    %39 = vector.broadcast %cst_12 : f32 to vector<64x1xf32>
    %40 = arith.cmpf ogt, %25, %39 : vector<64x1xf32>
    %cst_13 = arith.constant 0.0099833412 : f32
    %41 = vector.broadcast %cst_13 : f32 to vector<64x1xf32>
    %42 = arith.subf %25, %41 : vector<64x1xf32>
    %43 = arith.select %40, %38, %42 : vector<64x1xi1>, vector<64x1xf32>
    %cst_14 = arith.constant 1.000000e+01 : f32
    %44 = vector.broadcast %cst_14 : f32 to vector<64x1xf32>
    %45 = arith.mulf %43, %44 : vector<64x1xf32>
    %46 = vector.shape_cast %45 : vector<64x1xf32> to vector<64xf32>
    %c0_15 = arith.constant 0 : index
    %47 = arith.index_cast %c0_i32 : i32 to index
    %c0_16 = arith.constant 0 : index
    %48 = vector.load %arg3[%c0_15, %47, %c0_16] : memref<1x1x64xf32, #tpu.memory_space<vmem>>, vector<1x1x64xf32>
    %49 = vector.shape_cast %48 : vector<1x1x64xf32> to vector<64xf32>
    %50 = vector.shape_cast %46 : vector<64xf32> to vector<1x1x64xf32>
    tpu.vector_store %arg3[%c0_15, %47, %c0_16], %50 {strides = array<i32>} : memref<1x1x64xf32, #tpu.memory_space<vmem>>, vector<1x1x64xf32>,
    %c1_i32 = arith.constant 1 : i32
    return
  }
  func.func @transform_0(%arg0: i32) -> (i32, i32) {
    %c0_i32 = arith.constant 0 : i32
    %c0_i32_0 = arith.constant 0 : i32
    return %arg0, %c0_i32 : i32, i32
  }
  func.func @transform_1(%arg0: i32) -> (i32, i32) {
    %c0_i32 = arith.constant 0 : i32
    %c0_i32_0 = arith.constant 0 : i32
    return %arg0, %c0_i32 : i32, i32
  }
  func.func @transform_2(%arg0: i32) -> (i32, i32, i32) {
    %c0_i32 = arith.constant 0 : i32
    %c0_i32_0 = arith.constant 0 : i32
    %c0_i32_1 = arith.constant 0 : i32
    return %arg0, %c0_i32, %c0_i32_0 : i32, i32, i32
  }
}

module attributes {stable_mosaic.version = 11 : i64} {
  func.func @_arc_margin_kernel(%arg0: i32, %arg1: memref<64x128xf32, #tpu.memory_space<vmem>>, %arg2: memref<64x128xf32, #tpu.memory_space<vmem>>, %arg3: memref<64x1xf32, #tpu.memory_space<vmem>>) attributes {dimension_semantics = [#tpu.dimension_semantics<parallel>], iteration_bounds = array<i64: 1>, scalar_prefetch = 0 : i64, scratch_operands = 0 : i64, tpu.core_type = #tpu.core_type<tc>, window_params = [{transform_indices = @transform_0, window_bounds = array<i64: 64, 128>}, {transform_indices = @transform_1, window_bounds = array<i64: 64, 128>}, {transform_indices = @transform_2, window_bounds = array<i64: 64, 1>}]} {
    %c0_i32 = arith.constant 0 : i32
    %c64_i32 = arith.constant 64 : i32
    %0 = arith.muli %c0_i32, %c64_i32 : i32
    %1 = tpu.assume_multiple %0, 64 : i32
    %2 = arith.index_cast %1 : i32 to index
    %c0 = arith.constant 0 : index
    %3 = vector.load %arg1[%2, %c0] : memref<64x128xf32, #tpu.memory_space<vmem>>, vector<64x128xf32>
    %4 = arith.index_cast %1 : i32 to index
    %c0_0 = arith.constant 0 : index
    %5 = vector.load %arg2[%4, %c0_0] : memref<64x128xf32, #tpu.memory_space<vmem>>, vector<64x128xf32>
    %6 = arith.mulf %3, %5 : vector<64x128xf32>
    %cst = arith.constant dense<0.000000e+00> : vector<64xf32>
    %7 = vector.multi_reduction <add>, %6, %cst [1] : vector<64x128xf32> to vector<64xf32>
    %8 = vector.shape_cast %7 : vector<64xf32> to vector<64x1xf32>
    %9 = arith.mulf %3, %3 : vector<64x128xf32>
    %cst_1 = arith.constant dense<0.000000e+00> : vector<64xf32>
    %10 = vector.multi_reduction <add>, %9, %cst_1 [1] : vector<64x128xf32> to vector<64xf32>
    %11 = vector.shape_cast %10 : vector<64xf32> to vector<64x1xf32>
    %12 = arith.mulf %5, %5 : vector<64x128xf32>
    %cst_2 = arith.constant dense<0.000000e+00> : vector<64xf32>
    %13 = vector.multi_reduction <add>, %12, %cst_2 [1] : vector<64x128xf32> to vector<64xf32>
    %14 = vector.shape_cast %13 : vector<64xf32> to vector<64x1xf32>
    %cst_3 = arith.constant 1.000000e-16 : f32
    %15 = vector.broadcast %cst_3 : f32 to vector<64x1xf32>
    %16 = arith.maximumf %11, %15 : vector<64x1xf32>
    %cst_4 = arith.constant 1.000000e-16 : f32
    %17 = vector.broadcast %cst_4 : f32 to vector<64x1xf32>
    %18 = arith.maximumf %14, %17 : vector<64x1xf32>
    %19 = arith.mulf %16, %18 : vector<64x1xf32>
    %20 = math.rsqrt %19 : vector<64x1xf32>
    %21 = arith.mulf %8, %20 : vector<64x1xf32>
    %cst_5 = arith.constant -0.99999988 : f32
    %cst_6 = arith.constant 0.99999988 : f32
    %22 = vector.broadcast %cst_5 : f32 to vector<64x1xf32>
    %23 = arith.maximumf %22, %21 : vector<64x1xf32>
    %24 = vector.broadcast %cst_6 : f32 to vector<64x1xf32>
    %25 = arith.minimumf %24, %23 : vector<64x1xf32>
    %26 = arith.mulf %25, %25 : vector<64x1xf32>
    %cst_7 = arith.constant 1.000000e+00 : f32
    %27 = vector.broadcast %cst_7 : f32 to vector<64x1xf32>
    %28 = arith.subf %27, %26 : vector<64x1xf32>
    %cst_8 = arith.constant 1.000000e-07 : f32
    %cst_9 = arith.constant 0.99999988 : f32
    %29 = vector.broadcast %cst_8 : f32 to vector<64x1xf32>
    %30 = arith.maximumf %29, %28 : vector<64x1xf32>
    %31 = vector.broadcast %cst_9 : f32 to vector<64x1xf32>
    %32 = arith.minimumf %31, %30 : vector<64x1xf32>
    %33 = math.sqrt %32 : vector<64x1xf32>
    %cst_10 = arith.constant 0.995004177 : f32
    %34 = vector.broadcast %cst_10 : f32 to vector<64x1xf32>
    %35 = arith.mulf %25, %34 : vector<64x1xf32>
    %cst_11 = arith.constant 0.0998334139 : f32
    %36 = vector.broadcast %cst_11 : f32 to vector<64x1xf32>
    %37 = arith.mulf %33, %36 : vector<64x1xf32>
    %38 = arith.subf %35, %37 : vector<64x1xf32>
    %cst_12 = arith.constant -0.995004177 : f32
    %39 = vector.broadcast %cst_12 : f32 to vector<64x1xf32>
    %40 = arith.cmpf ogt, %25, %39 : vector<64x1xf32>
    %cst_13 = arith.constant 0.0099833412 : f32
    %41 = vector.broadcast %cst_13 : f32 to vector<64x1xf32>
    %42 = arith.subf %25, %41 : vector<64x1xf32>
    %43 = arith.select %40, %38, %42 : vector<64x1xi1>, vector<64x1xf32>
    %cst_14 = arith.constant 1.000000e+01 : f32
    %44 = vector.broadcast %cst_14 : f32 to vector<64x1xf32>
    %45 = arith.mulf %43, %44 : vector<64x1xf32>
    %46 = arith.index_cast %1 : i32 to index
    %c0_15 = arith.constant 0 : index
    %47 = vector.load %arg3[%46, %c0_15] : memref<64x1xf32, #tpu.memory_space<vmem>>, vector<64x1xf32>
    tpu.vector_store %arg3[%46, %c0_15], %45 {strides = array<i32>} : memref<64x1xf32, #tpu.memory_space<vmem>>, vector<64x1xf32>,
    %c1_i32 = arith.constant 1 : i32
    return
  }
  func.func @transform_0(%arg0: i32) -> (i32, i32) {
    %c0_i32 = arith.constant 0 : i32
    %c0_i32_0 = arith.constant 0 : i32
    return %arg0, %c0_i32 : i32, i32
  }
  func.func @transform_1(%arg0: i32) -> (i32, i32) {
    %c0_i32 = arith.constant 0 : i32
    %c0_i32_0 = arith.constant 0 : i32
    return %arg0, %c0_i32 : i32, i32
  }
  func.func @transform_2(%arg0: i32) -> (i32, i32) {
    %c0_i32 = arith.constant 0 : i32
    %c0_i32_0 = arith.constant 0 : i32
    return %arg0, %c0_i32 : i32, i32
  }
}

</mosaic_0001>

<llo_original>
// kernel: tpu_custom_call.1
$region0: #{tpu_custom_call.1}
  #allocation0 [shape = 'u32[]', space=smem, size = 0x4, offset = 0x4, fixed_abs, tag = 'smem constant byte address 0x4 - core index']
  #allocation1 [shape = 'u32[144,128]{1,0:T(1,128)}', space=vmem, size = 0x12000, scoped, tag = 'internal scratch']
  %s0 = inlined_call_operand.hbm [shape: f32[64,128], index: 0, kind: input, shape index: {}]
  %s1 = inlined_call_operand.hbm [shape: f32[64,128], index: 1, kind: input, shape index: {}]
  %s2 = inlined_call_operand.hbm [shape: f32[1,1,64], index: 2, kind: output, shape index: {}]
  %s3 = sld [smem:[#allocation0]]
  $region26: #{tpu_custom_call.1} parent=0
    _
  %s5 = ssub.s32 1, %s3
  %s6 = scalar_select 0, %s5, %s3
  $region1: #{tpu_custom_call.1} parent=0
    #allocation2 [shape = 'u8[32768]{0}', space=vmem, size = 0x8000, scoped, tag = 'input window, operand 0, single buffered']
    #allocation3 [shape = 's32[1]{0}', space=sflag, size = 0x4, scoped, tag = 'scoped memory for tpu_custom_call.1']
    #allocation4 [shape = 's32[1]{0}', space=sflag, size = 0x4, scoped, tag = 'scoped memory for tpu_custom_call.1']
    #allocation5 [shape = 'u8[32768]{0}', space=vmem, size = 0x8000, scoped, tag = 'input window, operand 1, single buffered']
    #allocation6 [shape = 's32[1]{0}', space=sflag, size = 0x4, scoped, tag = 'scoped memory for tpu_custom_call.1']
    #allocation7 [shape = 'u8[512]{0}', space=vmem, size = 0x400, scoped, tag = 'output window, operand 0, single buffered']
    %7 = vsyncpa [#allocation3], 0
    %8 = vsyncpa [#allocation6], 0
    %9 = vsyncpa [#allocation4], 0
    // Predicated region
    $region2: #{tpu_custom_call.1} parent=1 // pred_check
      _
    $region3: #{tpu_custom_call.1} parent=1 // pred_check_branch
      %11 = sbr.rel (0) target = $region5
    $region4: #{tpu_custom_call.1} parent=1 // pred_region
      %s13 = ssub.s32 1024, 1024
      %14 = vsyncadd [#allocation3], %s13
      %s15 = sshll.u32 [#allocation2], 4
      %s16 = int_to_ptr.vmem [resolvable:$true] %s15
      %21 = dma.hbm_to_vmem [thread:$0]  %s0, 1024, %s16, [#allocation3], 128, 128, 8
    $region5: #{tpu_custom_call.1} parent=1 // pred_fallthru
      _
    // Predicated region
    $region6: #{tpu_custom_call.1} parent=1 // pred_check
      _
    $region7: #{tpu_custom_call.1} parent=1 // pred_check_branch
      %23 = sbr.rel (0) target = $region9
    $region8: #{tpu_custom_call.1} parent=1 // pred_region
      %s25 = ssub.s32 1024, 1024
      %26 = vsyncadd [#allocation6], %s25
      %s27 = sshll.u32 [#allocation5], 4
      %s28 = int_to_ptr.vmem [resolvable:$true] %s27
      %33 = dma.hbm_to_vmem [thread:$0]  %s1, 1024, %s28, [#allocation6], 128, 128, 8
    $region9: #{tpu_custom_call.1} parent=1 // pred_fallthru
      _
    // Predicated region
    $region10: #{tpu_custom_call.1} parent=1 // pred_check
      _
    $region11: #{tpu_custom_call.1} parent=1 // pred_check_branch
      %35 = sbr.rel (0) target = $region13
    $region12: #{tpu_custom_call.1} parent=1 // pred_region
      %36 = dma.done [#allocation3], 1024
    $region13: #{tpu_custom_call.1} parent=1 // pred_fallthru
      _
    // Predicated region
    $region14: #{tpu_custom_call.1} parent=1 // pred_check
      _
    $region15: #{tpu_custom_call.1} parent=1 // pred_check_branch
      %38 = sbr.rel (0) target = $region17
    $region16: #{tpu_custom_call.1} parent=1 // pred_region
      %39 = dma.done [#allocation6], 1024
    $region17: #{tpu_custom_call.1} parent=1 // pred_fallthru
      _
    %v40 = vld [vmem:[#allocation2] sm:$0xff]
    %v41 = vld [vmem:[#allocation2 + $0x8] sm:$0xff]
    %v42 = vld [vmem:[#allocation2 + $0x10] sm:$0xff]
    %v43 = vld [vmem:[#allocation2 + $0x18] sm:$0xff]
    %v44 = vld [vmem:[#allocation2 + $0x20] sm:$0xff]
    %v45 = vld [vmem:[#allocation2 + $0x28] sm:$0xff]
    %v46 = vld [vmem:[#allocation2 + $0x30] sm:$0xff]
    %v47 = vld [vmem:[#allocation2 + $0x38] sm:$0xff]
    %v48 = vld [vmem:[#allocation5] sm:$0xff]
    %v49 = vld [vmem:[#allocation5 + $0x8] sm:$0xff]
    %v50 = vld [vmem:[#allocation5 + $0x10] sm:$0xff]
    %v51 = vld [vmem:[#allocation5 + $0x18] sm:$0xff]
    %v52 = vld [vmem:[#allocation5 + $0x20] sm:$0xff]
    %v53 = vld [vmem:[#allocation5 + $0x28] sm:$0xff]
    %v54 = vld [vmem:[#allocation5 + $0x30] sm:$0xff]
    %v55 = vld [vmem:[#allocation5 + $0x38] sm:$0xff]
    %v56 = vmul.f32 %v40, %v48
    %v57 = vmul.f32 %v41, %v49
    %v58 = vmul.f32 %v42, %v50
    %v59 = vmul.f32 %v43, %v51
    %v60 = vmul.f32 %v44, %v52
    %v61 = vmul.f32 %v45, %v53
    %v62 = vmul.f32 %v46, %v54
    %v63 = vmul.f32 %v47, %v55
    %64 = vadd.xlane.f32.xlu0 %v56
    %v65 = vpop.xlane.xlu0 %64
    %66 = vadd.xlane.f32.xlu0 %v57
    %v67 = vpop.xlane.xlu0 %66
    %68 = vadd.xlane.f32.xlu0 %v58
    %v69 = vpop.xlane.xlu0 %68
    %70 = vadd.xlane.f32.xlu0 %v59
    %v71 = vpop.xlane.xlu0 %70
    %72 = vadd.xlane.f32.xlu0 %v60
    %v73 = vpop.xlane.xlu0 %72
    %74 = vadd.xlane.f32.xlu0 %v61
    %v75 = vpop.xlane.xlu0 %74
    %76 = vadd.xlane.f32.xlu0 %v62
    %v77 = vpop.xlane.xlu0 %76
    %78 = vadd.xlane.f32.xlu0 %v63
    %v79 = vpop.xlane.xlu0 %78
    %v80 = vmul.f32 %v40, %v40
    %v81 = vmul.f32 %v41, %v41
    %v82 = vmul.f32 %v42, %v42
    %v83 = vmul.f32 %v43, %v43
    %v84 = vmul.f32 %v44, %v44
    %v85 = vmul.f32 %v45, %v45
    %v86 = vmul.f32 %v46, %v46
    %v87 = vmul.f32 %v47, %v47
    %88 = vadd.xlane.f32.xlu0 %v80
    %v89 = vpop.xlane.xlu0 %88
    %90 = vadd.xlane.f32.xlu0 %v81
    %v91 = vpop.xlane.xlu0 %90
    %92 = vadd.xlane.f32.xlu0 %v82
    %v93 = vpop.xlane.xlu0 %92
    %94 = vadd.xlane.f32.xlu0 %v83
    %v95 = vpop.xlane.xlu0 %94
    %96 = vadd.xlane.f32.xlu0 %v84
    %v97 = vpop.xlane.xlu0 %96
    %98 = vadd.xlane.f32.xlu0 %v85
    %v99 = vpop.xlane.xlu0 %98
    %100 = vadd.xlane.f32.xlu0 %v86
    %v101 = vpop.xlane.xlu0 %100
    %102 = vadd.xlane.f32.xlu0 %v87
    %v103 = vpop.xlane.xlu0 %102
    %v104 = vmul.f32 %v48, %v48
    %v105 = vmul.f32 %v49, %v49
    %v106 = vmul.f32 %v50, %v50
    %v107 = vmul.f32 %v51, %v51
    %v108 = vmul.f32 %v52, %v52
    %v109 = vmul.f32 %v53, %v53
    %v110 = vmul.f32 %v54, %v54
    %v111 = vmul.f32 %v55, %v55
    %112 = vadd.xlane.f32.xlu0 %v104
    %v113 = vpop.xlane.xlu0 %112
    %114 = vadd.xlane.f32.xlu0 %v105
    %v115 = vpop.xlane.xlu0 %114
    %116 = vadd.xlane.f32.xlu0 %v106
    %v117 = vpop.xlane.xlu0 %116
    %118 = vadd.xlane.f32.xlu0 %v107
    %v119 = vpop.xlane.xlu0 %118
    %120 = vadd.xlane.f32.xlu0 %v108
    %v121 = vpop.xlane.xlu0 %120
    %122 = vadd.xlane.f32.xlu0 %v109
    %v123 = vpop.xlane.xlu0 %122
    %124 = vadd.xlane.f32.xlu0 %v110
    %v125 = vpop.xlane.xlu0 %124
    %126 = vadd.xlane.f32.xlu0 %v111
    %v127 = vpop.xlane.xlu0 %126
    %v128 = vmax.f32 %v89, 1e-16
    %v129 = vmax.f32 %v91, 1e-16
    %v130 = vmax.f32 %v93, 1e-16
    %v131 = vmax.f32 %v95, 1e-16
    %v132 = vmax.f32 %v97, 1e-16
    %v133 = vmax.f32 %v99, 1e-16
    %v134 = vmax.f32 %v101, 1e-16
    %v135 = vmax.f32 %v103, 1e-16
    %v136 = vmax.f32 %v113, 1e-16
    %v137 = vmax.f32 %v115, 1e-16
    %v138 = vmax.f32 %v117, 1e-16
    %v139 = vmax.f32 %v119, 1e-16
    %v140 = vmax.f32 %v121, 1e-16
    %v141 = vmax.f32 %v123, 1e-16
    %v142 = vmax.f32 %v125, 1e-16
    %v143 = vmax.f32 %v127, 1e-16
    %v144 = vmul.f32 %v128, %v136
    %v145 = vmul.f32 %v129, %v137
    %v146 = vmul.f32 %v130, %v138
    %v147 = vmul.f32 %v131, %v139
    %v148 = vmul.f32 %v132, %v140
    %v149 = vmul.f32 %v133, %v141
    %v150 = vmul.f32 %v134, %v142
    %v151 = vmul.f32 %v135, %v143
    %v152 = vrsqrt.pop %v144
    %v153 = vrsqrt.pop %v145
    %v154 = vrsqrt.pop %v146
    %v155 = vrsqrt.pop %v147
    %v156 = vrsqrt.pop %v148
    %v157 = vrsqrt.pop %v149
    %v158 = vrsqrt.pop %v150
    %v159 = vrsqrt.pop %v151
    %v160 = vmul.f32 %v65, %v152
    %v161 = vmul.f32 %v67, %v153
    %v162 = vmul.f32 %v69, %v154
    %v163 = vmul.f32 %v71, %v155
    %v164 = vmul.f32 %v73, %v156
    %v165 = vmul.f32 %v75, %v157
    %v166 = vmul.f32 %v77, %v158
    %v167 = vmul.f32 %v79, %v159
    %v168 = vmax.f32 %v160, -0.9999999
    %v169 = vmax.f32 %v161, -0.9999999
    %v170 = vmax.f32 %v162, -0.9999999
    %v171 = vmax.f32 %v163, -0.9999999
    %v172 = vmax.f32 %v164, -0.9999999
    %v173 = vmax.f32 %v165, -0.9999999
    %v174 = vmax.f32 %v166, -0.9999999
    %v175 = vmax.f32 %v167, -0.9999999
    %v176 = vmin.f32 %v168, 0.9999999
    %v177 = vmin.f32 %v169, 0.9999999
    %v178 = vmin.f32 %v170, 0.9999999
    %v179 = vmin.f32 %v171, 0.9999999
    %v180 = vmin.f32 %v172, 0.9999999
    %v181 = vmin.f32 %v173, 0.9999999
    %v182 = vmin.f32 %v174, 0.9999999
    %v183 = vmin.f32 %v175, 0.9999999
    %v184 = vmul.f32 %v176, %v176
    %v185 = vmul.f32 %v177, %v177
    %v186 = vmul.f32 %v178, %v178
    %v187 = vmul.f32 %v179, %v179
    %v188 = vmul.f32 %v180, %v180
    %v189 = vmul.f32 %v181, %v181
    %v190 = vmul.f32 %v182, %v182
    %v191 = vmul.f32 %v183, %v183
    %v192 = vsub.f32 1.0, %v184
    %v193 = vsub.f32 1.0, %v185
    %v194 = vsub.f32 1.0, %v186
    %v195 = vsub.f32 1.0, %v187
    %v196 = vsub.f32 1.0, %v188
    %v197 = vsub.f32 1.0, %v189
    %v198 = vsub.f32 1.0, %v190
    %v199 = vsub.f32 1.0, %v191
    %v200 = vmax.f32 %v192, 1e-07
    %v201 = vmax.f32 %v193, 1e-07
    %v202 = vmax.f32 %v194, 1e-07
    %v203 = vmax.f32 %v195, 1e-07
    %v204 = vmax.f32 %v196, 1e-07
    %v205 = vmax.f32 %v197, 1e-07
    %v206 = vmax.f32 %v198, 1e-07
    %v207 = vmax.f32 %v199, 1e-07
    %v208 = vmin.f32 %v200, 0.9999999
    %v209 = vmin.f32 %v201, 0.9999999
    %v210 = vmin.f32 %v202, 0.9999999
    %v211 = vmin.f32 %v203, 0.9999999
    %v212 = vmin.f32 %v204, 0.9999999
    %v213 = vmin.f32 %v205, 0.9999999
    %v214 = vmin.f32 %v206, 0.9999999
    %v215 = vmin.f32 %v207, 0.9999999
    %v216 = vrsqrt.pop %v208
    %v217 = vmul.f32 %v208, %v216
    %vm218 = vcmp.eq.f32.partialorder %v208, inf
    %v219 = vsel %vm218, %v208, %v217
    %vm220 = vcmp.eq.f32.partialorder %v208, 0.0
    %v221 = vand.u32 %v208, 2147483648
    %v222 = vsel %vm220, %v221, %v219
    %v223 = vrsqrt.pop %v209
    %v224 = vmul.f32 %v209, %v223
    %vm225 = vcmp.eq.f32.partialorder %v209, inf
    %v226 = vsel %vm225, %v209, %v224
    %vm227 = vcmp.eq.f32.partialorder %v209, 0.0
    %v228 = vand.u32 %v209, 2147483648
    %v229 = vsel %vm227, %v228, %v226
    %v230 = vrsqrt.pop %v210
    %v231 = vmul.f32 %v210, %v230
    %vm232 = vcmp.eq.f32.partialorder %v210, inf
    %v233 = vsel %vm232, %v210, %v231
    %vm234 = vcmp.eq.f32.partialorder %v210, 0.0
    %v235 = vand.u32 %v210, 2147483648
    %v236 = vsel %vm234, %v235, %v233
    %v237 = vrsqrt.pop %v211
    %v238 = vmul.f32 %v211, %v237
    %vm239 = vcmp.eq.f32.partialorder %v211, inf
    %v240 = vsel %vm239, %v211, %v238
    %vm241 = vcmp.eq.f32.partialorder %v211, 0.0
    %v242 = vand.u32 %v211, 2147483648
    %v243 = vsel %vm241, %v242, %v240
    %v244 = vrsqrt.pop %v212
    %v245 = vmul.f32 %v212, %v244
    %vm246 = vcmp.eq.f32.partialorder %v212, inf
    %v247 = vsel %vm246, %v212, %v245
    %vm248 = vcmp.eq.f32.partialorder %v212, 0.0
    %v249 = vand.u32 %v212, 2147483648
    %v250 = vsel %vm248, %v249, %v247
    %v251 = vrsqrt.pop %v213
    %v252 = vmul.f32 %v213, %v251
    %vm253 = vcmp.eq.f32.partialorder %v213, inf
    %v254 = vsel %vm253, %v213, %v252
    %vm255 = vcmp.eq.f32.partialorder %v213, 0.0
    %v256 = vand.u32 %v213, 2147483648
    %v257 = vsel %vm255, %v256, %v254
    %v258 = vrsqrt.pop %v214
    %v259 = vmul.f32 %v214, %v258
    %vm260 = vcmp.eq.f32.partialorder %v214, inf
    %v261 = vsel %vm260, %v214, %v259
    %vm262 = vcmp.eq.f32.partialorder %v214, 0.0
    %v263 = vand.u32 %v214, 2147483648
    %v264 = vsel %vm262, %v263, %v261
    %v265 = vrsqrt.pop %v215
    %v266 = vmul.f32 %v215, %v265
    %vm267 = vcmp.eq.f32.partialorder %v215, inf
    %v268 = vsel %vm267, %v215, %v266
    %vm269 = vcmp.eq.f32.partialorder %v215, 0.0
    %v270 = vand.u32 %v215, 2147483648
    %v271 = vsel %vm269, %v270, %v268
    %v272 = vmul.f32 %v176, 0.9950042
    %v273 = vmul.f32 %v177, 0.9950042
    %v274 = vmul.f32 %v178, 0.9950042
    %v275 = vmul.f32 %v179, 0.9950042
    %v276 = vmul.f32 %v180, 0.9950042
    %v277 = vmul.f32 %v181, 0.9950042
    %v278 = vmul.f32 %v182, 0.9950042
    %v279 = vmul.f32 %v183, 0.9950042
    %v280 = vmul.f32 %v222, 0.099833414
    %v281 = vmul.f32 %v229, 0.099833414
    %v282 = vmul.f32 %v236, 0.099833414
    %v283 = vmul.f32 %v243, 0.099833414
    %v284 = vmul.f32 %v250, 0.099833414
    %v285 = vmul.f32 %v257, 0.099833414
    %v286 = vmul.f32 %v264, 0.099833414
    %v287 = vmul.f32 %v271, 0.099833414
    %v288 = vsub.f32 %v272, %v280
    %v289 = vsub.f32 %v273, %v281
    %v290 = vsub.f32 %v274, %v282
    %v291 = vsub.f32 %v275, %v283
    %v292 = vsub.f32 %v276, %v284
    %v293 = vsub.f32 %v277, %v285
    %v294 = vsub.f32 %v278, %v286
    %v295 = vsub.f32 %v279, %v287
    %vm296 = vcmp.gt.f32.partialorder %v176, -0.9950042
    %vm297 = vcmp.gt.f32.partialorder %v177, -0.9950042
    %vm298 = vcmp.gt.f32.partialorder %v178, -0.9950042
    %vm299 = vcmp.gt.f32.partialorder %v179, -0.9950042
    %vm300 = vcmp.gt.f32.partialorder %v180, -0.9950042
    %vm301 = vcmp.gt.f32.partialorder %v181, -0.9950042
    %vm302 = vcmp.gt.f32.partialorder %v182, -0.9950042
    %vm303 = vcmp.gt.f32.partialorder %v183, -0.9950042
    %v304 = vsub.f32 %v176, 0.009983341
    %v305 = vsub.f32 %v177, 0.009983341
    %v306 = vsub.f32 %v178, 0.009983341
    %v307 = vsub.f32 %v179, 0.009983341
    %v308 = vsub.f32 %v180, 0.009983341
    %v309 = vsub.f32 %v181, 0.009983341
    %v310 = vsub.f32 %v182, 0.009983341
    %v311 = vsub.f32 %v183, 0.009983341
    %v312 = vsel %vm296, %v288, %v304
    %v313 = vsel %vm297, %v289, %v305
    %v314 = vsel %vm298, %v290, %v306
    %v315 = vsel %vm299, %v291, %v307
    %v316 = vsel %vm300, %v292, %v308
    %v317 = vsel %vm301, %v293, %v309
    %v318 = vsel %vm302, %v294, %v310
    %v319 = vsel %vm303, %v295, %v311
    %v320 = vmul.f32 %v312, 10.0
    %v321 = vmul.f32 %v313, 10.0
    %v322 = vmul.f32 %v314, 10.0
    %v323 = vmul.f32 %v315, 10.0
    %v324 = vmul.f32 %v316, 10.0
    %v325 = vmul.f32 %v317, 10.0
    %v326 = vmul.f32 %v318, 10.0
    %v327 = vmul.f32 %v319, 10.0
    %v336 = vlaneseq
    %v337 = vand.u32 %v336, 127
    %v338 = vlaneseq
    %v339 = vshrl.u32 %v338, 7
    %v340 = vsub.s32 %v337, %v339
    %v341 = vrot.slane %v320, %v340
    %v342 = vadd.s32 %v337, 4294967288
    %v343 = vlaneseq
    %v344 = vshrl.u32 %v343, 7
    %v345 = vsub.s32 %v342, %v344
    %v346 = vrot.slane %v321, %v345
    %vm347 = vcmask 130112
    %v348 = vsel %vm347, %v346, %v341
    %v349 = vadd.s32 %v337, 4294967280
    %v350 = vlaneseq
    %v351 = vshrl.u32 %v350, 7
    %v352 = vsub.s32 %v349, %v351
    %v353 = vrot.slane %v322, %v352
    %vm354 = vcmask 195712
    %v355 = vsel %vm354, %v353, %v348
    %v356 = vadd.s32 %v337, 4294967272
    %v357 = vlaneseq
    %v358 = vshrl.u32 %v357, 7
    %v359 = vsub.s32 %v356, %v358
    %v360 = vrot.slane %v323, %v359
    %vm361 = vcmask 261312
    %v362 = vsel %vm361, %v360, %v355
    %v363 = vadd.s32 %v337, 4294967264
    %v364 = vlaneseq
    %v365 = vshrl.u32 %v364, 7
    %v366 = vsub.s32 %v363, %v365
    %v367 = vrot.slane %v324, %v366
    %vm368 = vcmask 326912
    %v369 = vsel %vm368, %v367, %v362
    %v370 = vadd.s32 %v337, 4294967256
    %v371 = vlaneseq
    %v372 = vshrl.u32 %v371, 7
    %v373 = vsub.s32 %v370, %v372
    %v374 = vrot.slane %v325, %v373
    %vm375 = vcmask 392512
    %v376 = vsel %vm375, %v374, %v369
    %v377 = vadd.s32 %v337, 4294967248
    %v378 = vlaneseq
    %v379 = vshrl.u32 %v378, 7
    %v380 = vsub.s32 %v377, %v379
    %v381 = vrot.slane %v326, %v380
    %vm382 = vcmask 458112
    %v383 = vsel %vm382, %v381, %v376
    %v384 = vadd.s32 %v337, 4294967240
    %v385 = vlaneseq
    %v386 = vshrl.u32 %v385, 7
    %v387 = vsub.s32 %v384, %v386
    %v388 = vrot.slane %v327, %v387
    %vm389 = vcmask 523712
    %v390 = vsel %vm389, %v388, %v383
    %vm392 = vcmask 516096
    %393 = vst.msk [vmem:[#allocation7] sm:$0x1] %vm392, %v390
    // Predicated region
    $region18: #{tpu_custom_call.1} parent=1 // pred_check
      _
    $region19: #{tpu_custom_call.1} parent=1 // pred_check_branch
      %395 = sbr.rel (0) target = $region21
    $region20: #{tpu_custom_call.1} parent=1 // pred_region
      %s397 = ssub.s32 16, 16
      %398 = vsyncadd [#allocation4], %s397
      %s400 = sshll.u32 [#allocation7], 4
      %s401 = int_to_ptr.vmem [resolvable:$true] %s400
      %403 = dma.vmem_to_hbm [thread:$0]  %s401, 16, %s2, [#allocation4]
    $region21: #{tpu_custom_call.1} parent=1 // pred_fallthru
      _
    // Predicated region
    $region22: #{tpu_custom_call.1} parent=1 // pred_check
      _
    $region23: #{tpu_custom_call.1} parent=1 // pred_check_branch
      %405 = sbr.rel (0) target = $region25
    $region24: #{tpu_custom_call.1} parent=1 // pred_region
      %406 = dma.done [#allocation4], 16
    $region25: #{tpu_custom_call.1} parent=1 // pred_fallthru
      _
    %407 = vsyncpa [#allocation3], 1
    %408 = vsyncpa [#allocation6], 1
    %409 = vsyncpa [#allocation4], 1

// kernel: tpu_custom_call.1
$region0: #{tpu_custom_call.1}
  #allocation0 [shape = 'u32[]', space=smem, size = 0x4, offset = 0x4, fixed_abs, tag = 'smem constant byte address 0x4 - core index']
  #allocation1 [shape = 'u32[144,128]{1,0:T(1,128)}', space=vmem, size = 0x12000, scoped, tag = 'internal scratch']
  %s0 = inlined_call_operand.hbm [shape: f32[64,128], index: 0, kind: input, shape index: {}]
  %s1 = inlined_call_operand.hbm [shape: f32[64,128], index: 1, kind: input, shape index: {}]
  %s2 = inlined_call_operand.vmem [shape: f32[64,1], index: 2, kind: output, shape index: {}]
  %s3 = sld [smem:[#allocation0]]
  $region26: #{tpu_custom_call.1} parent=0
    _
  %s5 = ssub.s32 1, %s3
  %s6 = scalar_select 0, %s5, %s3
  $region1: #{tpu_custom_call.1} parent=0
    #allocation2 [shape = 'u8[32768]{0}', space=vmem, size = 0x8000, scoped, tag = 'input window, operand 0, single buffered']
    #allocation3 [shape = 's32[1]{0}', space=sflag, size = 0x4, scoped, tag = 'scoped memory for tpu_custom_call.1']
    #allocation4 [shape = 'u8[32768]{0}', space=vmem, size = 0x8000, scoped, tag = 'input window, operand 1, single buffered']
    #allocation5 [shape = 's32[1]{0}', space=sflag, size = 0x4, scoped, tag = 'scoped memory for tpu_custom_call.1']
    %7 = vsyncpa [#allocation3], 0
    %8 = vsyncpa [#allocation5], 0
    // Predicated region
    $region2: #{tpu_custom_call.1} parent=1 // pred_check
      _
    $region3: #{tpu_custom_call.1} parent=1 // pred_check_branch
      %10 = sbr.rel (0) target = $region5
    $region4: #{tpu_custom_call.1} parent=1 // pred_region
      %s12 = ssub.s32 1024, 1024
      %13 = vsyncadd [#allocation3], %s12
      %s14 = sshll.u32 [#allocation2], 4
      %s15 = int_to_ptr.vmem [resolvable:$true] %s14
      %20 = dma.hbm_to_vmem [thread:$0]  %s0, 1024, %s15, [#allocation3], 128, 128, 8
    $region5: #{tpu_custom_call.1} parent=1 // pred_fallthru
      _
    // Predicated region
    $region6: #{tpu_custom_call.1} parent=1 // pred_check
      _
    $region7: #{tpu_custom_call.1} parent=1 // pred_check_branch
      %22 = sbr.rel (0) target = $region9
    $region8: #{tpu_custom_call.1} parent=1 // pred_region
      %s24 = ssub.s32 1024, 1024
      %25 = vsyncadd [#allocation5], %s24
      %s26 = sshll.u32 [#allocation4], 4
      %s27 = int_to_ptr.vmem [resolvable:$true] %s26
      %32 = dma.hbm_to_vmem [thread:$0]  %s1, 1024, %s27, [#allocation5], 128, 128, 8
    $region9: #{tpu_custom_call.1} parent=1 // pred_fallthru
      _
    // Predicated region
    $region10: #{tpu_custom_call.1} parent=1 // pred_check
      _
    $region11: #{tpu_custom_call.1} parent=1 // pred_check_branch
      %34 = sbr.rel (0) target = $region13
    $region12: #{tpu_custom_call.1} parent=1 // pred_region
      %35 = dma.done [#allocation3], 1024
    $region13: #{tpu_custom_call.1} parent=1 // pred_fallthru
      _
    // Predicated region
    $region14: #{tpu_custom_call.1} parent=1 // pred_check
      _
    $region15: #{tpu_custom_call.1} parent=1 // pred_check_branch
      %37 = sbr.rel (0) target = $region17
    $region16: #{tpu_custom_call.1} parent=1 // pred_region
      %38 = dma.done [#allocation5], 1024
    $region17: #{tpu_custom_call.1} parent=1 // pred_fallthru
      _
    %v39 = vld [vmem:[#allocation2] sm:$0xff]
    %v40 = vld [vmem:[#allocation2 + $0x8] sm:$0xff]
    %v41 = vld [vmem:[#allocation2 + $0x10] sm:$0xff]
    %v42 = vld [vmem:[#allocation2 + $0x18] sm:$0xff]
    %v43 = vld [vmem:[#allocation2 + $0x20] sm:$0xff]
    %v44 = vld [vmem:[#allocation2 + $0x28] sm:$0xff]
    %v45 = vld [vmem:[#allocation2 + $0x30] sm:$0xff]
    %v46 = vld [vmem:[#allocation2 + $0x38] sm:$0xff]
    %v47 = vld [vmem:[#allocation4] sm:$0xff]
    %v48 = vld [vmem:[#allocation4 + $0x8] sm:$0xff]
    %v49 = vld [vmem:[#allocation4 + $0x10] sm:$0xff]
    %v50 = vld [vmem:[#allocation4 + $0x18] sm:$0xff]
    %v51 = vld [vmem:[#allocation4 + $0x20] sm:$0xff]
    %v52 = vld [vmem:[#allocation4 + $0x28] sm:$0xff]
    %v53 = vld [vmem:[#allocation4 + $0x30] sm:$0xff]
    %v54 = vld [vmem:[#allocation4 + $0x38] sm:$0xff]
    %v55 = vmul.f32 %v39, %v47
    %v56 = vmul.f32 %v40, %v48
    %v57 = vmul.f32 %v41, %v49
    %v58 = vmul.f32 %v42, %v50
    %v59 = vmul.f32 %v43, %v51
    %v60 = vmul.f32 %v44, %v52
    %v61 = vmul.f32 %v45, %v53
    %v62 = vmul.f32 %v46, %v54
    %63 = vadd.xlane.f32.xlu0 %v55
    %v64 = vpop.xlane.xlu0 %63
    %65 = vadd.xlane.f32.xlu0 %v56
    %v66 = vpop.xlane.xlu0 %65
    %67 = vadd.xlane.f32.xlu0 %v57
    %v68 = vpop.xlane.xlu0 %67
    %69 = vadd.xlane.f32.xlu0 %v58
    %v70 = vpop.xlane.xlu0 %69
    %71 = vadd.xlane.f32.xlu0 %v59
    %v72 = vpop.xlane.xlu0 %71
    %73 = vadd.xlane.f32.xlu0 %v60
    %v74 = vpop.xlane.xlu0 %73
    %75 = vadd.xlane.f32.xlu0 %v61
    %v76 = vpop.xlane.xlu0 %75
    %77 = vadd.xlane.f32.xlu0 %v62
    %v78 = vpop.xlane.xlu0 %77
    %v79 = vmul.f32 %v39, %v39
    %v80 = vmul.f32 %v40, %v40
    %v81 = vmul.f32 %v41, %v41
    %v82 = vmul.f32 %v42, %v42
    %v83 = vmul.f32 %v43, %v43
    %v84 = vmul.f32 %v44, %v44
    %v85 = vmul.f32 %v45, %v45
    %v86 = vmul.f32 %v46, %v46
    %87 = vadd.xlane.f32.xlu0 %v79
    %v88 = vpop.xlane.xlu0 %87
    %89 = vadd.xlane.f32.xlu0 %v80
    %v90 = vpop.xlane.xlu0 %89
    %91 = vadd.xlane.f32.xlu0 %v81
    %v92 = vpop.xlane.xlu0 %91
    %93 = vadd.xlane.f32.xlu0 %v82
    %v94 = vpop.xlane.xlu0 %93
    %95 = vadd.xlane.f32.xlu0 %v83
    %v96 = vpop.xlane.xlu0 %95
    %97 = vadd.xlane.f32.xlu0 %v84
    %v98 = vpop.xlane.xlu0 %97
    %99 = vadd.xlane.f32.xlu0 %v85
    %v100 = vpop.xlane.xlu0 %99
    %101 = vadd.xlane.f32.xlu0 %v86
    %v102 = vpop.xlane.xlu0 %101
    %v103 = vmul.f32 %v47, %v47
    %v104 = vmul.f32 %v48, %v48
    %v105 = vmul.f32 %v49, %v49
    %v106 = vmul.f32 %v50, %v50
    %v107 = vmul.f32 %v51, %v51
    %v108 = vmul.f32 %v52, %v52
    %v109 = vmul.f32 %v53, %v53
    %v110 = vmul.f32 %v54, %v54
    %111 = vadd.xlane.f32.xlu0 %v103
    %v112 = vpop.xlane.xlu0 %111
    %113 = vadd.xlane.f32.xlu0 %v104
    %v114 = vpop.xlane.xlu0 %113
    %115 = vadd.xlane.f32.xlu0 %v105
    %v116 = vpop.xlane.xlu0 %115
    %117 = vadd.xlane.f32.xlu0 %v106
    %v118 = vpop.xlane.xlu0 %117
    %119 = vadd.xlane.f32.xlu0 %v107
    %v120 = vpop.xlane.xlu0 %119
    %121 = vadd.xlane.f32.xlu0 %v108
    %v122 = vpop.xlane.xlu0 %121
    %123 = vadd.xlane.f32.xlu0 %v109
    %v124 = vpop.xlane.xlu0 %123
    %125 = vadd.xlane.f32.xlu0 %v110
    %v126 = vpop.xlane.xlu0 %125
    %v127 = vmax.f32 %v88, 1e-16
    %v128 = vmax.f32 %v90, 1e-16
    %v129 = vmax.f32 %v92, 1e-16
    %v130 = vmax.f32 %v94, 1e-16
    %v131 = vmax.f32 %v96, 1e-16
    %v132 = vmax.f32 %v98, 1e-16
    %v133 = vmax.f32 %v100, 1e-16
    %v134 = vmax.f32 %v102, 1e-16
    %v135 = vmax.f32 %v112, 1e-16
    %v136 = vmax.f32 %v114, 1e-16
    %v137 = vmax.f32 %v116, 1e-16
    %v138 = vmax.f32 %v118, 1e-16
    %v139 = vmax.f32 %v120, 1e-16
    %v140 = vmax.f32 %v122, 1e-16
    %v141 = vmax.f32 %v124, 1e-16
    %v142 = vmax.f32 %v126, 1e-16
    %v143 = vmul.f32 %v127, %v135
    %v144 = vmul.f32 %v128, %v136
    %v145 = vmul.f32 %v129, %v137
    %v146 = vmul.f32 %v130, %v138
    %v147 = vmul.f32 %v131, %v139
    %v148 = vmul.f32 %v132, %v140
    %v149 = vmul.f32 %v133, %v141
    %v150 = vmul.f32 %v134, %v142
    %v151 = vrsqrt.pop %v143
    %v152 = vrsqrt.pop %v144
    %v153 = vrsqrt.pop %v145
    %v154 = vrsqrt.pop %v146
    %v155 = vrsqrt.pop %v147
    %v156 = vrsqrt.pop %v148
    %v157 = vrsqrt.pop %v149
    %v158 = vrsqrt.pop %v150
    %v159 = vmul.f32 %v64, %v151
    %v160 = vmul.f32 %v66, %v152
    %v161 = vmul.f32 %v68, %v153
    %v162 = vmul.f32 %v70, %v154
    %v163 = vmul.f32 %v72, %v155
    %v164 = vmul.f32 %v74, %v156
    %v165 = vmul.f32 %v76, %v157
    %v166 = vmul.f32 %v78, %v158
    %v167 = vmax.f32 %v159, -0.9999999
    %v168 = vmax.f32 %v160, -0.9999999
    %v169 = vmax.f32 %v161, -0.9999999
    %v170 = vmax.f32 %v162, -0.9999999
    %v171 = vmax.f32 %v163, -0.9999999
    %v172 = vmax.f32 %v164, -0.9999999
    %v173 = vmax.f32 %v165, -0.9999999
    %v174 = vmax.f32 %v166, -0.9999999
    %v175 = vmin.f32 %v167, 0.9999999
    %v176 = vmin.f32 %v168, 0.9999999
    %v177 = vmin.f32 %v169, 0.9999999
    %v178 = vmin.f32 %v170, 0.9999999
    %v179 = vmin.f32 %v171, 0.9999999
    %v180 = vmin.f32 %v172, 0.9999999
    %v181 = vmin.f32 %v173, 0.9999999
    %v182 = vmin.f32 %v174, 0.9999999
    %v183 = vmul.f32 %v175, %v175
    %v184 = vmul.f32 %v176, %v176
    %v185 = vmul.f32 %v177, %v177
    %v186 = vmul.f32 %v178, %v178
    %v187 = vmul.f32 %v179, %v179
    %v188 = vmul.f32 %v180, %v180
    %v189 = vmul.f32 %v181, %v181
    %v190 = vmul.f32 %v182, %v182
    %v191 = vsub.f32 1.0, %v183
    %v192 = vsub.f32 1.0, %v184
    %v193 = vsub.f32 1.0, %v185
    %v194 = vsub.f32 1.0, %v186
    %v195 = vsub.f32 1.0, %v187
    %v196 = vsub.f32 1.0, %v188
    %v197 = vsub.f32 1.0, %v189
    %v198 = vsub.f32 1.0, %v190
    %v199 = vmax.f32 %v191, 1e-07
    %v200 = vmax.f32 %v192, 1e-07
    %v201 = vmax.f32 %v193, 1e-07
    %v202 = vmax.f32 %v194, 1e-07
    %v203 = vmax.f32 %v195, 1e-07
    %v204 = vmax.f32 %v196, 1e-07
    %v205 = vmax.f32 %v197, 1e-07
    %v206 = vmax.f32 %v198, 1e-07
    %v207 = vmin.f32 %v199, 0.9999999
    %v208 = vmin.f32 %v200, 0.9999999
    %v209 = vmin.f32 %v201, 0.9999999
    %v210 = vmin.f32 %v202, 0.9999999
    %v211 = vmin.f32 %v203, 0.9999999
    %v212 = vmin.f32 %v204, 0.9999999
    %v213 = vmin.f32 %v205, 0.9999999
    %v214 = vmin.f32 %v206, 0.9999999
    %v215 = vrsqrt.pop %v207
    %v216 = vmul.f32 %v207, %v215
    %vm217 = vcmp.eq.f32.partialorder %v207, inf
    %v218 = vsel %vm217, %v207, %v216
    %vm219 = vcmp.eq.f32.partialorder %v207, 0.0
    %v220 = vand.u32 %v207, 2147483648
    %v221 = vsel %vm219, %v220, %v218
    %v222 = vrsqrt.pop %v208
    %v223 = vmul.f32 %v208, %v222
    %vm224 = vcmp.eq.f32.partialorder %v208, inf
    %v225 = vsel %vm224, %v208, %v223
    %vm226 = vcmp.eq.f32.partialorder %v208, 0.0
    %v227 = vand.u32 %v208, 2147483648
    %v228 = vsel %vm226, %v227, %v225
    %v229 = vrsqrt.pop %v209
    %v230 = vmul.f32 %v209, %v229
    %vm231 = vcmp.eq.f32.partialorder %v209, inf
    %v232 = vsel %vm231, %v209, %v230
    %vm233 = vcmp.eq.f32.partialorder %v209, 0.0
    %v234 = vand.u32 %v209, 2147483648
    %v235 = vsel %vm233, %v234, %v232
    %v236 = vrsqrt.pop %v210
    %v237 = vmul.f32 %v210, %v236
    %vm238 = vcmp.eq.f32.partialorder %v210, inf
    %v239 = vsel %vm238, %v210, %v237
    %vm240 = vcmp.eq.f32.partialorder %v210, 0.0
    %v241 = vand.u32 %v210, 2147483648
    %v242 = vsel %vm240, %v241, %v239
    %v243 = vrsqrt.pop %v211
    %v244 = vmul.f32 %v211, %v243
    %vm245 = vcmp.eq.f32.partialorder %v211, inf
    %v246 = vsel %vm245, %v211, %v244
    %vm247 = vcmp.eq.f32.partialorder %v211, 0.0
    %v248 = vand.u32 %v211, 2147483648
    %v249 = vsel %vm247, %v248, %v246
    %v250 = vrsqrt.pop %v212
    %v251 = vmul.f32 %v212, %v250
    %vm252 = vcmp.eq.f32.partialorder %v212, inf
    %v253 = vsel %vm252, %v212, %v251
    %vm254 = vcmp.eq.f32.partialorder %v212, 0.0
    %v255 = vand.u32 %v212, 2147483648
    %v256 = vsel %vm254, %v255, %v253
    %v257 = vrsqrt.pop %v213
    %v258 = vmul.f32 %v213, %v257
    %vm259 = vcmp.eq.f32.partialorder %v213, inf
    %v260 = vsel %vm259, %v213, %v258
    %vm261 = vcmp.eq.f32.partialorder %v213, 0.0
    %v262 = vand.u32 %v213, 2147483648
    %v263 = vsel %vm261, %v262, %v260
    %v264 = vrsqrt.pop %v214
    %v265 = vmul.f32 %v214, %v264
    %vm266 = vcmp.eq.f32.partialorder %v214, inf
    %v267 = vsel %vm266, %v214, %v265
    %vm268 = vcmp.eq.f32.partialorder %v214, 0.0
    %v269 = vand.u32 %v214, 2147483648
    %v270 = vsel %vm268, %v269, %v267
    %v271 = vmul.f32 %v175, 0.9950042
    %v272 = vmul.f32 %v176, 0.9950042
    %v273 = vmul.f32 %v177, 0.9950042
    %v274 = vmul.f32 %v178, 0.9950042
    %v275 = vmul.f32 %v179, 0.9950042
    %v276 = vmul.f32 %v180, 0.9950042
    %v277 = vmul.f32 %v181, 0.9950042
    %v278 = vmul.f32 %v182, 0.9950042
    %v279 = vmul.f32 %v221, 0.099833414
    %v280 = vmul.f32 %v228, 0.099833414
    %v281 = vmul.f32 %v235, 0.099833414
    %v282 = vmul.f32 %v242, 0.099833414
    %v283 = vmul.f32 %v249, 0.099833414
    %v284 = vmul.f32 %v256, 0.099833414
    %v285 = vmul.f32 %v263, 0.099833414
    %v286 = vmul.f32 %v270, 0.099833414
    %v287 = vsub.f32 %v271, %v279
    %v288 = vsub.f32 %v272, %v280
    %v289 = vsub.f32 %v273, %v281
    %v290 = vsub.f32 %v274, %v282
    %v291 = vsub.f32 %v275, %v283
    %v292 = vsub.f32 %v276, %v284
    %v293 = vsub.f32 %v277, %v285
    %v294 = vsub.f32 %v278, %v286
    %vm295 = vcmp.gt.f32.partialorder %v175, -0.9950042
    %vm296 = vcmp.gt.f32.partialorder %v176, -0.9950042
    %vm297 = vcmp.gt.f32.partialorder %v177, -0.9950042
    %vm298 = vcmp.gt.f32.partialorder %v178, -0.9950042
    %vm299 = vcmp.gt.f32.partialorder %v179, -0.9950042
    %vm300 = vcmp.gt.f32.partialorder %v180, -0.9950042
    %vm301 = vcmp.gt.f32.partialorder %v181, -0.9950042
    %vm302 = vcmp.gt.f32.partialorder %v182, -0.9950042
    %v303 = vsub.f32 %v175, 0.009983341
    %v304 = vsub.f32 %v176, 0.009983341
    %v305 = vsub.f32 %v177, 0.009983341
    %v306 = vsub.f32 %v178, 0.009983341
    %v307 = vsub.f32 %v179, 0.009983341
    %v308 = vsub.f32 %v180, 0.009983341
    %v309 = vsub.f32 %v181, 0.009983341
    %v310 = vsub.f32 %v182, 0.009983341
    %v311 = vsel %vm295, %v287, %v303
    %v312 = vsel %vm296, %v288, %v304
    %v313 = vsel %vm297, %v289, %v305
    %v314 = vsel %vm298, %v290, %v306
    %v315 = vsel %vm299, %v291, %v307
    %v316 = vsel %vm300, %v292, %v308
    %v317 = vsel %vm301, %v293, %v309
    %v318 = vsel %vm302, %v294, %v310
    %v319 = vmul.f32 %v311, 10.0
    %v320 = vmul.f32 %v312, 10.0
    %v321 = vmul.f32 %v313, 10.0
    %v322 = vmul.f32 %v314, 10.0
    %v323 = vmul.f32 %v315, 10.0
    %v324 = vmul.f32 %v316, 10.0
    %v325 = vmul.f32 %v317, 10.0
    %v326 = vmul.f32 %v318, 10.0
    %vm327 = vcmask 7168
    %328 = vst.msk [vmem:[%s2] sm:$0xff] %vm327, %v319
    %329 = vst.msk [vmem:[%s2 + $0x8] sm:$0xff] %vm327, %v320
    %330 = vst.msk [vmem:[%s2 + $0x10] sm:$0xff] %vm327, %v321
    %331 = vst.msk [vmem:[%s2 + $0x18] sm:$0xff] %vm327, %v322
    %332 = vst.msk [vmem:[%s2 + $0x20] sm:$0xff] %vm327, %v323
    %333 = vst.msk [vmem:[%s2 + $0x28] sm:$0xff] %vm327, %v324
    %334 = vst.msk [vmem:[%s2 + $0x30] sm:$0xff] %vm327, %v325
    %335 = vst.msk [vmem:[%s2 + $0x38] sm:$0xff] %vm327, %v326
    // Predicated region
    $region18: #{tpu_custom_call.1} parent=1 // pred_check
      _
    $region19: #{tpu_custom_call.1} parent=1 // pred_check_branch
      %337 = sbr.rel (0) target = $region21
    $region20: #{tpu_custom_call.1} parent=1 // pred_region
      _
    $region21: #{tpu_custom_call.1} parent=1 // pred_fallthru
      _
    // Predicated region
    $region22: #{tpu_custom_call.1} parent=1 // pred_check
      _
    $region23: #{tpu_custom_call.1} parent=1 // pred_check_branch
      %339 = sbr.rel (0) target = $region25
    $region24: #{tpu_custom_call.1} parent=1 // pred_region
      _
    $region25: #{tpu_custom_call.1} parent=1 // pred_fallthru
      _
    %340 = vsyncpa [#allocation3], 1
    %341 = vsyncpa [#allocation5], 1

</llo_original>
